<compile_context>
chip_gen: v7x
topology: tpu7x:2x2x1
jax: 0.10.0
libtpu: 0.0.40
codegen_flags: <defaults>
</compile_context>

<pallas_src>
import functools

import jax
import jax.numpy as jnp
from jax import lax
from jax.experimental import pallas as pl
from jax.experimental.pallas import tpu as pltpu


_SQRT_HALF = 0.7071067811865476


def _gelu_exact(x):
    # torch.nn.functional.gelu default == exact erf GELU (computed in f32).
    return 0.5 * x * (1.0 + lax.erf(x * _SQRT_HALF))


def _round_up(n, m):
    return (n + m - 1) // m * m


def _sublane_multiple(*dtypes):
    # One (8,128) f32 vreg tile = 8 rows; sub-32-bit dtypes pack along sublanes.
    return max(max(8, 32 // jnp.dtype(d).itemsize) for d in dtypes)


def _pick_tn4(h4, target):
    """Largest 4H chunk <= target that divides 4H and is a multiple of 128.

    Falls back to the full 4H if no such divisor exists; the wrapper then
    re-checks the VMEM budget (guards the review's ragged-4H concern)."""
    if h4 <= target:
        return h4
    for c in range(target - target % 128, 127, -128):
        if h4 % c == 0:
            return c
    return h4


def _vmem_budget_bytes(frac=0.75):
    """~75% of the per-core VMEM capacity (v5e/v6e: ~96 MiB, v7x: ~48 MiB)."""
    cap = 64 << 20  # conservative default = v7x physical per-TC VMEM
    try:
        info = pltpu.get_tpu_info()
        cap = int(getattr(info, "vmem_capacity_bytes", cap) or cap)
    except Exception:
        pass
    return int(cap * frac)


# --------------------------------------------------------------------------
# Kernels
# --------------------------------------------------------------------------
def _mlp_resident_kernel(x_ref, w1_ref, b1_ref, w2_ref, b2_ref, o_ref,
                         *scratch, tn4, n_chunks):
    # x_ref : (tm, H)   token tile (original dtype; cast in-kernel)
    # w1_ref: (H, 4H)   fc1 weight, fully VMEM resident (DMAed once)
    # b1_ref: (1, 4H)   fc1 bias (f32)
    # w2_ref: (4H, H)   fc2 weight, fully VMEM resident
    # b2_ref: (1, H)    fc2 bias (f32)
    # o_ref : (tm, H)   output tile; doubles as the f32 accumulator when the
    #                   output dtype is f32 (then no scratch is allocated).
    acc_ref = scratch[0] if scratch else o_ref
    x = x_ref[...].astype(w1_ref.dtype)          # in-kernel activation cast

    # Fold the fc2 bias into the accumulator init.
    acc_ref[...] = jnp.broadcast_to(b2_ref[...], acc_ref.shape).astype(acc_ref.dtype)

    if n_chunks == 1:
        h = jnp.dot(x, w1_ref[...], preferred_element_type=jnp.float32)
        h = _gelu_exact(h + b1_ref[...])
        acc_ref[...] += jnp.dot(h.astype(w2_ref.dtype), w2_ref[...],
                                preferred_element_type=jnp.float32
                                ).astype(acc_ref.dtype)
    else:
        def chunk(j, carry):
            start = pl.multiple_of(j * tn4, tn4)
            h = jnp.dot(x, w1_ref[:, pl.ds(start, tn4)],
                        preferred_element_type=jnp.float32)
            h = _gelu_exact(h + b1_ref[:, pl.ds(start, tn4)])
            acc_ref[...] += jnp.dot(h.astype(w2_ref.dtype),
                                    w2_ref[pl.ds(start, tn4), :],
                                    preferred_element_type=jnp.float32
                                    ).astype(acc_ref.dtype)
            return carry

        lax.fori_loop(0, n_chunks, chunk, 0, unroll=n_chunks <= 8)

    if scratch:
        o_ref[...] = acc_ref[...].astype(o_ref.dtype)


def _mlp_streaming_kernel(x_ref, w1_ref, b1_ref, w2_ref, b2_ref, o_ref, *scratch):
    # 2-D grid: i = token tile ("parallel"), j = 4H chunk ("arbitrary").
    # x and o block indices are constant in j (resident across the reduction);
    # only the weight chunks are streamed along j.
    acc_ref = scratch[0] if scratch else o_ref
    j = pl.program_id(1)

    @pl.when(j == 0)
    def _init():
        acc_ref[...] = jnp.broadcast_to(b2_ref[...], acc_ref.shape
                                        ).astype(acc_ref.dtype)

    x = x_ref[...].astype(w1_ref.dtype)          # in-kernel activation cast
    h = jnp.dot(x, w1_ref[...], preferred_element_type=jnp.float32)
    h = _gelu_exact(h + b1_ref[...])
    acc_ref[...] += jnp.dot(h.astype(w2_ref.dtype), w2_ref[...],
                            preferred_element_type=jnp.float32
                            ).astype(acc_ref.dtype)

    if scratch:
        @pl.when(j == pl.num_programs(1) - 1)
        def _finish():
            o_ref[...] = acc_ref[...].astype(o_ref.dtype)


# --------------------------------------------------------------------------
# Host-side wrappers
# --------------------------------------------------------------------------
def prepare_gpt2_mlp_params(w1, b1, w2, b2, *, compute_dtype=None):
    """Call ONCE at init.  PyTorch Linear layout in: w1 (4H, H), w2 (H, 4H).

    Returns (w1_t, b1_2, w2_t, b2_2): weights transposed to (in, out) and cast
    to `compute_dtype` (e.g. bf16 for the MXU); biases kept in f32."""
    dt = compute_dtype if compute_dtype is not None else w1.dtype
    w1_t = jnp.asarray(jnp.transpose(w1), dtype=dt)            # (H, 4H)
    w2_t = jnp.asarray(jnp.transpose(w2), dtype=dt)            # (4H, H)
    b1_2 = jnp.asarray(b1, dtype=jnp.float32).reshape(1, -1)   # (1, 4H)
    b2_2 = jnp.asarray(b2, dtype=jnp.float32).reshape(1, -1)   # (1, H)
    return w1_t, b1_2, w2_t, b2_2


def gpt2_mlp(x, w1_t, b1_2, w2_t, b2_2, *, tm_target=256, tn4_target=1024,
             force_streaming=False):
    """x: (B, S, H); weights already prepared via prepare_gpt2_mlp_params."""
    B, S, H = x.shape
    H4 = w1_t.shape[1]
    assert w1_t.shape == (H, H4) and w2_t.shape == (H4, H)
    assert b1_2.shape == (1, H4) and b2_2.shape == (1, H)

    M = B * S
    out_dtype = x.dtype
    out_is_f32 = jnp.dtype(out_dtype) == jnp.float32
    x_item = jnp.dtype(x.dtype).itemsize
    w_item = jnp.dtype(w1_t.dtype).itemsize
    o_item = jnp.dtype(out_dtype).itemsize

    budget = _vmem_budget_bytes()
    slack = 2 << 20
    sm = _sublane_multiple(x.dtype, w1_t.dtype, out_dtype)

    tn4 = _pick_tn4(H4, tn4_target)
    weight_bytes = (H * H4 + H4 * H) * w_item + (H4 + H) * 4

    def tile_bytes(tm_, stream):
        # stream=False: both weights resident (count x2 for possible double
        # buffers); stream=True: double-buffered weight chunks.
        wb = 2 * (H * tn4 + tn4 * H) * w_item if stream else 2 * weight_bytes
        return (wb
                + 2 * tm_ * H * (x_item + o_item)        # x/out tile double buffers
                + (0 if out_is_f32 else tm_ * H * 4)     # f32 accumulator scratch
                + tm_ * tn4 * 4                          # GELU intermediate (f32)
                + slack)

    # --- token tile (multiple of the dtype's sublane packing) ---------------
    tm = min(tm_target, _round_up(M, sm))
    if M >= 256 and _round_up(M, tm) // tm < 2:
        tm = _round_up((M + 1) // 2, sm)   # keep >=2 token tiles for megacore/v7x

    # --- resident (weights DMAed once) vs streaming fallback ----------------
    use_resident = (not force_streaming) and tile_bytes(tm, stream=False) <= budget
    if not use_resident:
        # Raise tm toward the streamed-weight MXU/HBM crossover (~310 flop/byte
        # on v7x, ~670 on v6e) while staying inside the per-generation budget.
        tm = sm
        for cand in (1024, 768, 512, 384, 256, 128, sm):
            tm_c = min(_round_up(M, sm), _round_up(cand, sm))
            if tile_bytes(tm_c, stream=True) <= budget:
                tm = tm_c
                break

    m_pad = _round_up(M, tm)
    x2 = x.reshape(M, H)                      # original dtype; cast happens in-kernel
    if m_pad != M:
        x2 = jnp.pad(x2, ((0, m_pad - M), (0, 0)))

    vmem_limit = int(min(budget,
                         max(16 << 20,
                             tile_bytes(tm, stream=not use_resident) + (4 << 20))))
    scratch_shapes = [] if out_is_f32 else [pltpu.VMEM((tm, H), jnp.float32)]

    if use_resident:
        grid = (m_pad // tm,)
        kernel = functools.partial(_mlp_resident_kernel,
                                   tn4=tn4, n_chunks=H4 // tn4)
        in_specs = [
            pl.BlockSpec((tm, H), lambda i: (i, 0)),    # x tile
            pl.BlockSpec((H, H4), lambda i: (0, 0)),    # w1^T, resident (DMA once)
            pl.BlockSpec((1, H4), lambda i: (0, 0)),    # b1
            pl.BlockSpec((H4, H), lambda i: (0, 0)),    # w2^T, resident (DMA once)
            pl.BlockSpec((1, H), lambda i: (0, 0)),     # b2
        ]
        out_specs = pl.BlockSpec((tm, H), lambda i: (i, 0))
        dim_sem = ("parallel",)
    else:
        grid = (m_pad // tm, H4 // tn4)
        kernel = _mlp_streaming_kernel
        in_specs = [
            pl.BlockSpec((tm, H), lambda i, j: (i, 0)),   # x tile (resident in j)
            pl.BlockSpec((H, tn4), lambda i, j: (0, j)),  # w1^T chunk
            pl.BlockSpec((1, tn4), lambda i, j: (0, j)),  # b1 chunk
            pl.BlockSpec((tn4, H), lambda i, j: (j, 0)),  # w2^T chunk
            pl.BlockSpec((1, H), lambda i, j: (0, 0)),    # b2
        ]
        out_specs = pl.BlockSpec((tm, H), lambda i, j: (i, 0))
        dim_sem = ("parallel", "arbitrary")

    out = pl.pallas_call(
        kernel,
        out_shape=jax.ShapeDtypeStruct((m_pad, H), out_dtype),
        grid_spec=pltpu.PrefetchScalarGridSpec(
            num_scalar_prefetch=0,
            grid=grid,
            in_specs=in_specs,
            out_specs=out_specs,
            scratch_shapes=scratch_shapes,
        ),
        compiler_params=pltpu.CompilerParams(
            dimension_semantics=dim_sem,
            vmem_limit_bytes=vmem_limit,
        ),
    )(x2, w1_t, b1_2, w2_t, b2_2)

    if m_pad != M:
        out = out[:M]
    return out.reshape(B, S, H)


# --------------------------------------------------------------------------
# Reference + tests
# --------------------------------------------------------------------------
def gpt2_mlp_ref(x, w1, b1, w2, b2):
    # Pure-JAX reference using the original PyTorch (out, in) weight layout.
    h = jnp.einsum("bsh,oh->bso", x, w1) + b1
    h = _gelu_exact(h)
    return jnp.einsum("bso,ho->bsh", h, w2) + b2


def _make_params(key, H, dtype=jnp.float32):
    k1, k2, k3, k4 = jax.random.split(key, 4)
    w1 = jax.random.normal(k1, (4 * H, H), dtype=dtype) * 0.05   # (out, in)
    b1 = jax.random.normal(k2, (4 * H,), dtype=dtype) * 0.05
    w2 = jax.random.normal(k3, (H, 4 * H), dtype=dtype) * 0.05
    b2 = jax.random.normal(k4, (H,), dtype=dtype) * 0.05
    return w1, b1, w2, b2


if __name__ == "__main__":
    key = jax.random.PRNGKey(0)
    kx1, kx2, kp1, kp2 = jax.random.split(key, 4)

    # --- Test 1: small H, f32, single 4H chunk, weight-resident path --------
    B, S, H = 2, 8, 32
    x = jax.random.normal(kx1, (B, S, H), dtype=jnp.float32)
    w1, b1, w2, b2 = _make_params(kp1, H)
    params_f32 = prepare_gpt2_mlp_params(w1, b1, w2, b2)      # once, at "init"
    y = jax.block_until_ready(gpt2_mlp(x, *params_f32))
    y_ref = gpt2_mlp_ref(x, w1, b1, w2, b2)
    assert y.shape == (B, S, H)
    assert jnp.allclose(y, y_ref, atol=1e-5, rtol=1e-5), "f32 mismatch"

    # --- Test 2: ragged tokens + multi-chunk in-kernel 4H loop --------------
    B2, S2, H2 = 2, 5, 64
    x2 = jax.random.normal(kx2, (B2, S2, H2), dtype=jnp.float32)
    w1b, b1b, w2b, b2b = _make_params(kp2, H2)
    params2 = prepare_gpt2_mlp_params(w1b, b1b, w2b, b2b)
    y2 = jax.block_until_ready(gpt2_mlp(x2, *params2, tn4_target=128))
    y2_ref = gpt2_mlp_ref(x2, w1b, b1b, w2b, b2b)
    assert y2.shape == (B2, S2, H2)
    assert jnp.allclose(y2, y2_ref, atol=1e-4, rtol=1e-4), "chunked f32 mismatch"

    # --- Test 3: streaming fallback path (2-D grid, accumulate over 4H) -----
    y3 = jax.block_until_ready(
        gpt2_mlp(x2, *params2, tn4_target=128, force_streaming=True))
    assert jnp.allclose(y3, y2_ref, atol=1e-4, rtol=1e-4), "streaming mismatch"

    # --- Test 4: bf16 weights, in-kernel activation cast, f32 accumulation --
    params_bf16 = prepare_gpt2_mlp_params(w1b, b1b, w2b, b2b,
                                          compute_dtype=jnp.bfloat16)
    y4 = jax.block_until_ready(gpt2_mlp(x2, *params_bf16, tn4_target=128))
    assert jnp.allclose(y4, y2_ref, atol=0.15, rtol=0.15), "bf16 mismatch"

    print("KERNEL_OK")
</pallas_src>

<mosaic_0001>
module attributes {stable_mosaic.version = 11 : i64} {
  func.func @_mlp_resident_kernel(%arg0: i32, %arg1: memref<16x32xf32, #tpu.memory_space<vmem>>, %arg2: memref<32x128xf32, #tpu.memory_space<vmem>>, %arg3: memref<1x128xf32, #tpu.memory_space<vmem>>, %arg4: memref<128x32xf32, #tpu.memory_space<vmem>>, %arg5: memref<1x32xf32, #tpu.memory_space<vmem>>, %arg6: memref<16x32xf32, #tpu.memory_space<vmem>>) attributes {dimension_semantics = [#tpu.dimension_semantics<parallel>], iteration_bounds = array<i64: 1>, scalar_prefetch = 0 : i64, scratch_operands = 0 : i64, tpu.core_type = #tpu.core_type<tc>, window_params = [{transform_indices = @transform_0, window_bounds = array<i64: 16, 32>}, {pipeline_mode = #tpu.pipeline_mode<synchronous>, transform_indices = @transform_1, window_bounds = array<i64: 32, 128>}, {pipeline_mode = #tpu.pipeline_mode<synchronous>, transform_indices = @transform_2, window_bounds = array<i64: 1, 128>}, {pipeline_mode = #tpu.pipeline_mode<synchronous>, transform_indices = @transform_3, window_bounds = array<i64: 128, 32>}, {pipeline_mode = #tpu.pipeline_mode<synchronous>, transform_indices = @transform_4, window_bounds = array<i64: 1, 32>}, {transform_indices = @transform_5, window_bounds = array<i64: 16, 32>}]} {
    %c0 = arith.constant 0 : index
    %c0_0 = arith.constant 0 : index
    %0 = vector.load %arg1[%c0, %c0_0] : memref<16x32xf32, #tpu.memory_space<vmem>>, vector<16x32xf32>
    %c0_1 = arith.constant 0 : index
    %c0_2 = arith.constant 0 : index
    %1 = vector.load %arg5[%c0_1, %c0_2] : memref<1x32xf32, #tpu.memory_space<vmem>>, vector<1x32xf32>
    %2 = vector.shape_cast %1 : vector<1x32xf32> to vector<1x32xf32>
    %3 = vector.broadcast %2 : vector<1x32xf32> to vector<16x32xf32>
    %c0_3 = arith.constant 0 : index
    %c0_4 = arith.constant 0 : index
    %4 = vector.load %arg6[%c0_3, %c0_4] : memref<16x32xf32, #tpu.memory_space<vmem>>, vector<16x32xf32>
    tpu.vector_store %arg6[%c0_3, %c0_4], %3 {strides = array<i32>} : memref<16x32xf32, #tpu.memory_space<vmem>>, vector<16x32xf32>,
    %c0_5 = arith.constant 0 : index
    %c0_6 = arith.constant 0 : index
    %5 = vector.load %arg2[%c0_5, %c0_6] : memref<32x128xf32, #tpu.memory_space<vmem>>, vector<32x128xf32>
    %cst = arith.constant dense<0.000000e+00> : vector<16x128xf32>
    %6 = tpu.matmul %0, %5, %cst {dimension_numbers = #tpu.dot_dimension_numbers<[1], [0], [0], [1], [0, 0, 1, 1], [], []>} : vector<16x32xf32>, vector<32x128xf32>, vector<16x128xf32> -> vector<16x128xf32>
    %c0_7 = arith.constant 0 : index
    %c0_8 = arith.constant 0 : index
    %7 = vector.load %arg3[%c0_7, %c0_8] : memref<1x128xf32, #tpu.memory_space<vmem>>, vector<1x128xf32>
    %8 = vector.broadcast %7 : vector<1x128xf32> to vector<16x128xf32>
    %9 = arith.addf %6, %8 : vector<16x128xf32>
    %cst_9 = arith.constant 5.000000e-01 : f32
    %10 = vector.broadcast %cst_9 : f32 to vector<16x128xf32>
    %11 = arith.mulf %10, %9 : vector<16x128xf32>
    %cst_10 = arith.constant 0.707106769 : f32
    %12 = vector.broadcast %cst_10 : f32 to vector<16x128xf32>
    %13 = arith.mulf %9, %12 : vector<16x128xf32>
    %14 = math.erf %13 : vector<16x128xf32>
    %cst_11 = arith.constant 1.000000e+00 : f32
    %15 = vector.broadcast %cst_11 : f32 to vector<16x128xf32>
    %16 = arith.addf %15, %14 : vector<16x128xf32>
    %17 = arith.mulf %11, %16 : vector<16x128xf32>
    %c0_12 = arith.constant 0 : index
    %c0_13 = arith.constant 0 : index
    %18 = vector.load %arg6[%c0_12, %c0_13] : memref<16x32xf32, #tpu.memory_space<vmem>>, vector<16x32xf32>
    %c0_14 = arith.constant 0 : index
    %c0_15 = arith.constant 0 : index
    %19 = vector.load %arg4[%c0_14, %c0_15] : memref<128x32xf32, #tpu.memory_space<vmem>>, vector<128x32xf32>
    %cst_16 = arith.constant dense<0.000000e+00> : vector<16x32xf32>
    %20 = tpu.matmul %17, %19, %cst_16 {dimension_numbers = #tpu.dot_dimension_numbers<[1], [0], [0], [1], [0, 0, 1, 1], [], []>} : vector<16x128xf32>, vector<128x32xf32>, vector<16x32xf32> -> vector<16x32xf32>
    %21 = arith.addf %18, %20 : vector<16x32xf32>
    %c0_17 = arith.constant 0 : index
    %c0_18 = arith.constant 0 : index
    %22 = vector.load %arg6[%c0_17, %c0_18] : memref<16x32xf32, #tpu.memory_space<vmem>>, vector<16x32xf32>
    tpu.vector_store %arg6[%c0_17, %c0_18], %21 {strides = array<i32>} : memref<16x32xf32, #tpu.memory_space<vmem>>, vector<16x32xf32>,
    return
  }
  func.func @transform_0(%arg0: i32) -> (i32, i32) {
    %c0_i32 = arith.constant 0 : i32
    %c0_i32_0 = arith.constant 0 : i32
    return %arg0, %c0_i32 : i32, i32
  }
  func.func @transform_1(%arg0: i32) -> (i32, i32) {
    %c0_i32 = arith.constant 0 : i32
    %c0_i32_0 = arith.constant 0 : i32
    %c0_i32_1 = arith.constant 0 : i32
    return %c0_i32, %c0_i32_0 : i32, i32
  }
  func.func @transform_2(%arg0: i32) -> (i32, i32) {
    %c0_i32 = arith.constant 0 : i32
    %c0_i32_0 = arith.constant 0 : i32
    %c0_i32_1 = arith.constant 0 : i32
    return %c0_i32, %c0_i32_0 : i32, i32
  }
  func.func @transform_3(%arg0: i32) -> (i32, i32) {
    %c0_i32 = arith.constant 0 : i32
    %c0_i32_0 = arith.constant 0 : i32
    %c0_i32_1 = arith.constant 0 : i32
    return %c0_i32, %c0_i32_0 : i32, i32
  }
  func.func @transform_4(%arg0: i32) -> (i32, i32) {
    %c0_i32 = arith.constant 0 : i32
    %c0_i32_0 = arith.constant 0 : i32
    %c0_i32_1 = arith.constant 0 : i32
    return %c0_i32, %c0_i32_0 : i32, i32
  }
  func.func @transform_5(%arg0: i32) -> (i32, i32) {
    %c0_i32 = arith.constant 0 : i32
    %c0_i32_0 = arith.constant 0 : i32
    return %arg0, %c0_i32 : i32, i32
  }
}

</mosaic_0001>

<llo_original>
// kernel: tpu_custom_call.1
$region0: #{tpu_custom_call.1}
  #allocation0 [shape = 'u32[]', space=smem, size = 0x4, offset = 0x4, fixed_abs, tag = 'smem constant byte address 0x4 - core index']
  #allocation1 [shape = 'u32[144,128]{1,0:T(1,128)}', space=vmem, size = 0x12000, scoped, tag = 'internal scratch']
  %s0 = inlined_call_operand.vmem [shape: f32[16,32], index: 0, kind: input, shape index: {}]
  %s1 = inlined_call_operand.vmem [shape: f32[32,128], index: 1, kind: input, shape index: {}]
  %s2 = inlined_call_operand.vmem [shape: f32[1,128], index: 2, kind: input, shape index: {}]
  %s3 = inlined_call_operand.vmem [shape: f32[128,32], index: 3, kind: input, shape index: {}]
  %s4 = inlined_call_operand.vmem [shape: f32[1,32], index: 4, kind: input, shape index: {}]
  %s5 = inlined_call_operand.hbm [shape: f32[16,32], index: 5, kind: output, shape index: {}]
  %s6 = sld [smem:[#allocation0]]
  $region30: #{tpu_custom_call.1} parent=0
    _
  %s8 = ssub.s32 1, %s6
  %s9 = scalar_select 0, %s8, %s6
  $region1: #{tpu_custom_call.1} parent=0
    #allocation2 [shape = 'u8[8192]{0}', space=vmem, size = 0x2000, scoped, tag = 'output window, operand 0, single buffered']
    #allocation3 [shape = 's32[1]{0}', space=sflag, size = 0x4, scoped, tag = 'scoped memory for tpu_custom_call.1']
    %10 = vsyncpa [#allocation3], 0
    // Predicated region
    $region2: #{tpu_custom_call.1} parent=1 // pred_check
      _
    $region3: #{tpu_custom_call.1} parent=1 // pred_check_branch
      %12 = sbr.rel (0) target = $region5
    $region4: #{tpu_custom_call.1} parent=1 // pred_region
      _
    $region5: #{tpu_custom_call.1} parent=1 // pred_fallthru
      _
    // Predicated region
    $region6: #{tpu_custom_call.1} parent=1 // pred_check
      _
    $region7: #{tpu_custom_call.1} parent=1 // pred_check_branch
      %14 = sbr.rel (0) target = $region9
    $region8: #{tpu_custom_call.1} parent=1 // pred_region
      _
    $region9: #{tpu_custom_call.1} parent=1 // pred_fallthru
      _
    // Predicated region
    $region10: #{tpu_custom_call.1} parent=1 // pred_check
      _
    $region11: #{tpu_custom_call.1} parent=1 // pred_check_branch
      %16 = sbr.rel (0) target = $region13
    $region12: #{tpu_custom_call.1} parent=1 // pred_region
      _
    $region13: #{tpu_custom_call.1} parent=1 // pred_fallthru
      _
    // Predicated region
    $region14: #{tpu_custom_call.1} parent=1 // pred_check
      _
    $region15: #{tpu_custom_call.1} parent=1 // pred_check_branch
      %18 = sbr.rel (0) target = $region17
    $region16: #{tpu_custom_call.1} parent=1 // pred_region
      _
    $region17: #{tpu_custom_call.1} parent=1 // pred_fallthru
      _
    // Predicated region
    $region18: #{tpu_custom_call.1} parent=1 // pred_check
      _
    $region19: #{tpu_custom_call.1} parent=1 // pred_check_branch
      %20 = sbr.rel (0) target = $region21
    $region20: #{tpu_custom_call.1} parent=1 // pred_region
      _
    $region21: #{tpu_custom_call.1} parent=1 // pred_fallthru
      _
    %v21 = vld [vmem:[%s0] sm:$0xff]
    %v22 = vld [vmem:[%s0 + $0x8] sm:$0xff]
    %v23 = vld [vmem:[%s4] sm:$0x1]
    %v25 = vlaneseq
    %v26 = vshrl.u32 %v25, 7
    %v27 = vsub.s32 0, %v26
    %v28 = vrot.slane %v23, %v27
    %vm30 = vcmask 261120
    %31 = vst.msk [vmem:[#allocation2] sm:$0xff] %vm30, %v28
    %32 = vst.msk [vmem:[#allocation2 + $0x8] sm:$0xff] %vm30, %v28
    %v33 = vld [vmem:[%s1] sm:$0xff]
    %v34 = vld [vmem:[%s1 + $0x8] sm:$0xff]
    %v35 = vld [vmem:[%s1 + $0x10] sm:$0xff]
    %v36 = vld [vmem:[%s1 + $0x18] sm:$0xff]
    %v37 = vld [vmem:[%s2] sm:$0x1]
    %v39 = vlaneseq
    %v40 = vshrl.u32 %v39, 7
    %v41 = vsub.s32 0, %v40
    %v42 = vrot.slane %v37, %v41
    %v45 = vsel %vm30, %v21, 0
    %v48 = vsel %vm30, %v22, 0
    %50 = vmatprep.subr.mxu0 0.0
    %51 = vmatpush1.msra.mxu0 %v33
    %52 = vmatprep.subr.mxu0 0.0
    %53 = vmatpush1.msra.mxu0 %v34
    %54 = vmatprep.subr.mxu0 0.0
    %55 = vmatpush1.msra.mxu0 %v35
    %56 = vmatprep.subr.mxu0 0.0
    %57 = vmatpush1.msra.mxu0 %v36
    %58 = vmatprep.subr.mxu0 0.0
    %59 = vmatpush1.msra.mxu0 0.0
    %60 = vmatprep.subr.mxu0 0.0
    %61 = vmatpush1.msra.mxu0 0.0
    %62 = vmatprep.subr.mxu0 0.0
    %63 = vmatpush1.msra.mxu0 0.0
    %64 = vmatprep.subr.mxu0 0.0
    %65 = vmatpush1.msra.mxu0 0.0
    %66 = vmatprep.subr.mxu0 0.0
    %67 = vmatpush1.msra.mxu0 0.0
    %68 = vmatprep.subr.mxu0 0.0
    %69 = vmatpush1.msra.mxu0 0.0
    %70 = vmatprep.subr.mxu0 0.0
    %71 = vmatpush1.msra.mxu0 0.0
    %72 = vmatprep.subr.mxu0 0.0
    %73 = vmatpush1.msra.mxu0 0.0
    %74 = vmatprep.subr.mxu0 0.0
    %75 = vmatpush1.msra.mxu0 0.0
    %76 = vmatprep.subr.mxu0 0.0
    %77 = vmatpush1.msra.mxu0 0.0
    %78 = vmatprep.subr.mxu0 0.0
    %79 = vmatpush1.msra.mxu0 0.0
    %80 = vmatprep.subr.mxu0 0.0
    %81 = vmatpush1.msra.mxu0 0.0
    %82 = vmatprep.subr.mxu0 0.0
    %83 = vmatpush1.msra.mxu0 0.0
    %84 = vmatprep.subr.mxu0 0.0
    %85 = vmatpush1.msra.mxu0 0.0
    %86 = vmatprep.subr.mxu0 0.0
    %87 = vmatpush1.msra.mxu0 0.0
    %88 = vmatprep.subr.mxu0 0.0
    %89 = vmatpush1.msra.mxu0 0.0
    %90 = vmatprep.subr.mxu0 0.0
    %91 = vmatpush1.msra.mxu0 0.0
    %92 = vmatprep.subr.mxu0 0.0
    %93 = vmatpush1.msra.mxu0 0.0
    %94 = vmatprep.subr.mxu0 0.0
    %95 = vmatpush1.msra.mxu0 0.0
    %96 = vmatprep.subr.mxu0 0.0
    %97 = vmatpush1.msra.mxu0 0.0
    %98 = vmatprep.subr.mxu0 0.0
    %99 = vmatpush1.msra.mxu0 0.0
    %100 = vmatprep.subr.mxu0 0.0
    %101 = vmatpush1.msra.mxu0 0.0
    %102 = vmatprep.subr.mxu0 0.0
    %103 = vmatpush1.msra.mxu0 0.0
    %104 = vmatprep.subr.mxu0 0.0
    %105 = vmatpush1.msra.mxu0 0.0
    %106 = vmatprep.subr.mxu0 0.0
    %107 = vmatpush1.msra.mxu0 0.0
    %108 = vmatprep.subr.mxu0 0.0
    %109 = vmatpush1.msra.mxu0 0.0
    %110 = vmatprep.subr.mxu0 0.0
    %111 = vmatpush1.msra.mxu0 0.0
    %112 = vmatprep.subr.mxu0 0.0
    %113 = vmatpush1.msra.mxu0 0.0
    %114 = vmatprep.mubr.f32.mxu0 0.0
    %115 = vmatmul.mubr.f32.gmra.mrb[0].mxu0 %v45
    %v116 = vpop.f32.mrb[0].mxu0
    %v117 = vadd.f32 %v42, %v116
    %v118 = vpop.f32.mrb[0].mxu0
    %119 = vmatprep.mubr.f32.mxu0 0.0
    %120 = vmatmul.mubr.f32.gmra.mrb[0].mxu0 %v48
    %v121 = vpop.f32.mrb[0].mxu0
    %v122 = vadd.f32 %v42, %v121
    %v123 = vpop.f32.mrb[0].mxu0
    %124 = vdwg.mxu0
    %v125 = vmul.f32 %v117, 0.5
    %v126 = vmul.f32 %v122, 0.5
    %v127 = vmul.f32 %v117, 0.70710677
    %v128 = vmul.f32 %v122, 0.70710677
    %v129 = verf.f32.pop %v127
    %v130 = verf.f32.pop %v128
    %v131 = vadd.f32 %v129, 1.0
    %v132 = vadd.f32 %v130, 1.0
    %v133 = vmul.f32 %v125, %v131
    %v134 = vmul.f32 %v126, %v132
    %v135 = vld [vmem:[#allocation2] sm:$0xff]
    %v136 = vld [vmem:[#allocation2 + $0x8] sm:$0xff]
    %v137 = vld [vmem:[%s3] sm:$0xff]
    %v138 = vld [vmem:[%s3 + $0x8] sm:$0xff]
    %v139 = vld [vmem:[%s3 + $0x10] sm:$0xff]
    %v140 = vld [vmem:[%s3 + $0x18] sm:$0xff]
    %v141 = vld [vmem:[%s3 + $0x20] sm:$0xff]
    %v142 = vld [vmem:[%s3 + $0x28] sm:$0xff]
    %v143 = vld [vmem:[%s3 + $0x30] sm:$0xff]
    %v144 = vld [vmem:[%s3 + $0x38] sm:$0xff]
    %v145 = vld [vmem:[%s3 + $0x40] sm:$0xff]
    %v146 = vld [vmem:[%s3 + $0x48] sm:$0xff]
    %v147 = vld [vmem:[%s3 + $0x50] sm:$0xff]
    %v148 = vld [vmem:[%s3 + $0x58] sm:$0xff]
    %v149 = vld [vmem:[%s3 + $0x60] sm:$0xff]
    %v150 = vld [vmem:[%s3 + $0x68] sm:$0xff]
    %v151 = vld [vmem:[%s3 + $0x70] sm:$0xff]
    %v152 = vld [vmem:[%s3 + $0x78] sm:$0xff]
    %153 = vmatprep.subr.mxu0 0.0
    %154 = vmatpush1.msra.mxu0 %v137
    %155 = vmatprep.subr.mxu0 0.0
    %156 = vmatpush1.msra.mxu0 %v138
    %157 = vmatprep.subr.mxu0 0.0
    %158 = vmatpush1.msra.mxu0 %v139
    %159 = vmatprep.subr.mxu0 0.0
    %160 = vmatpush1.msra.mxu0 %v140
    %161 = vmatprep.subr.mxu0 0.0
    %162 = vmatpush1.msra.mxu0 %v141
    %163 = vmatprep.subr.mxu0 0.0
    %164 = vmatpush1.msra.mxu0 %v142
    %165 = vmatprep.subr.mxu0 0.0
    %166 = vmatpush1.msra.mxu0 %v143
    %167 = vmatprep.subr.mxu0 0.0
    %168 = vmatpush1.msra.mxu0 %v144
    %169 = vmatprep.subr.mxu0 0.0
    %170 = vmatpush1.msra.mxu0 %v145
    %171 = vmatprep.subr.mxu0 0.0
    %172 = vmatpush1.msra.mxu0 %v146
    %173 = vmatprep.subr.mxu0 0.0
    %174 = vmatpush1.msra.mxu0 %v147
    %175 = vmatprep.subr.mxu0 0.0
    %176 = vmatpush1.msra.mxu0 %v148
    %177 = vmatprep.subr.mxu0 0.0
    %178 = vmatpush1.msra.mxu0 %v149
    %179 = vmatprep.subr.mxu0 0.0
    %180 = vmatpush1.msra.mxu0 %v150
    %181 = vmatprep.subr.mxu0 0.0
    %182 = vmatpush1.msra.mxu0 %v151
    %183 = vmatprep.subr.mxu0 0.0
    %184 = vmatpush1.msra.mxu0 %v152
    %185 = vmatprep.subr.mxu0 0.0
    %186 = vmatpush1.msra.mxu0 0.0
    %187 = vmatprep.subr.mxu0 0.0
    %188 = vmatpush1.msra.mxu0 0.0
    %189 = vmatprep.subr.mxu0 0.0
    %190 = vmatpush1.msra.mxu0 0.0
    %191 = vmatprep.subr.mxu0 0.0
    %192 = vmatpush1.msra.mxu0 0.0
    %193 = vmatprep.subr.mxu0 0.0
    %194 = vmatpush1.msra.mxu0 0.0
    %195 = vmatprep.subr.mxu0 0.0
    %196 = vmatpush1.msra.mxu0 0.0
    %197 = vmatprep.subr.mxu0 0.0
    %198 = vmatpush1.msra.mxu0 0.0
    %199 = vmatprep.subr.mxu0 0.0
    %200 = vmatpush1.msra.mxu0 0.0
    %201 = vmatprep.subr.mxu0 0.0
    %202 = vmatpush1.msra.mxu0 0.0
    %203 = vmatprep.subr.mxu0 0.0
    %204 = vmatpush1.msra.mxu0 0.0
    %205 = vmatprep.subr.mxu0 0.0
    %206 = vmatpush1.msra.mxu0 0.0
    %207 = vmatprep.subr.mxu0 0.0
    %208 = vmatpush1.msra.mxu0 0.0
    %209 = vmatprep.subr.mxu0 0.0
    %210 = vmatpush1.msra.mxu0 0.0
    %211 = vmatprep.subr.mxu0 0.0
    %212 = vmatpush1.msra.mxu0 0.0
    %213 = vmatprep.subr.mxu0 0.0
    %214 = vmatpush1.msra.mxu0 0.0
    %215 = vmatprep.subr.mxu0 0.0
    %216 = vmatpush1.msra.mxu0 0.0
    %217 = vmatprep.mubr.f32.mxu0 0.0
    %218 = vmatmul.mubr.f32.gmra.mrb[0].mxu0 %v133
    %v219 = vpop.f32.mrb[0].mxu0
    %v220 = vadd.f32 0.0, %v219
    %v221 = vpop.f32.mrb[0].mxu0
    %222 = vmatprep.mubr.f32.mxu0 0.0
    %223 = vmatmul.mubr.f32.gmra.mrb[0].mxu0 %v134
    %v224 = vpop.f32.mrb[0].mxu0
    %v225 = vadd.f32 0.0, %v224
    %v226 = vpop.f32.mrb[0].mxu0
    %227 = vdwg.mxu0
    %v228 = vadd.f32 %v135, %v220
    %v229 = vadd.f32 %v136, %v225
    %230 = vst.msk [vmem:[#allocation2] sm:$0xff] %vm30, %v228
    %231 = vst.msk [vmem:[#allocation2 + $0x8] sm:$0xff] %vm30, %v229
    // Predicated region
    $region22: #{tpu_custom_call.1} parent=1 // pred_check
      _
    $region23: #{tpu_custom_call.1} parent=1 // pred_check_branch
      %233 = sbr.rel (0) target = $region25
    $region24: #{tpu_custom_call.1} parent=1 // pred_region
      %s235 = ssub.s32 256, 256
      %236 = vsyncadd [#allocation3], %s235
      %s237 = sshll.u32 [#allocation2], 4
      %s238 = int_to_ptr.vmem [resolvable:$true] %s237
      %243 = dma.vmem_to_hbm [thread:$0]  %s238, 256, %s5, [#allocation3], 128, 128, 8
    $region25: #{tpu_custom_call.1} parent=1 // pred_fallthru
      _
    // Predicated region
    $region26: #{tpu_custom_call.1} parent=1 // pred_check
      _
    $region27: #{tpu_custom_call.1} parent=1 // pred_check_branch
      %245 = sbr.rel (0) target = $region29
    $region28: #{tpu_custom_call.1} parent=1 // pred_region
      %246 = dma.done [#allocation3], 256
    $region29: #{tpu_custom_call.1} parent=1 // pred_fallthru
      _
    %247 = vsyncpa [#allocation3], 1

</llo_original>
